<compile_context>
chip_gen: v5e
topology: v5e:2x2
jax: 0.10.0
libtpu: 0.0.40
codegen_flags: <defaults>
</compile_context>

<pallas_src>
import math
from functools import partial

import jax
import jax.numpy as jnp
from jax import lax
from jax.experimental import pallas as pl
from jax.experimental.pallas import tpu as pltpu


# --------------------------------------------------------------------------
# Buffer construction (matches PositionEncoding.__init__, shape (seq, d_model))
# --------------------------------------------------------------------------
def sinusoidal_position_encoding(seq_len: int, d_model: int,
                                 dtype=jnp.float32) -> jax.Array:
    position = jnp.arange(seq_len, dtype=jnp.float32)[:, None]          # (S, 1)
    div_term = jnp.exp(jnp.arange(0, d_model, 2, dtype=jnp.float32)
                       * (-math.log(10000.0) / d_model))                # (D/2,)
    angles = position * div_term                                        # (S, D/2)
    pe = jnp.zeros((seq_len, d_model), dtype=jnp.float32)
    pe = pe.at[:, 0::2].set(jnp.sin(angles))
    pe = pe.at[:, 1::2].set(jnp.cos(angles)[:, : d_model // 2])
    return pe.astype(dtype)


# --------------------------------------------------------------------------
# Kernels
# --------------------------------------------------------------------------
def _pe_add_kernel(x_ref, pe_ref, o_ref):
    # x_ref: (TB, TS, D); pe_ref: (TS, D) broadcast over the batch tile.
    o_ref[...] = (x_ref[...] + pe_ref[...][None]).astype(o_ref.dtype)


def _splitmix32(x):
    # Stateless 32-bit finalizer (splitmix/murmur-style). Pure VPU uint32 ops.
    x = x ^ lax.shift_right_logical(x, jnp.uint32(16))
    x = x * jnp.uint32(0x7FEB352D)
    x = x ^ lax.shift_right_logical(x, jnp.uint32(15))
    x = x * jnp.uint32(0x846CA68B)
    x = x ^ lax.shift_right_logical(x, jnp.uint32(16))
    return x


def _pe_add_dropout_kernel(seed_ref, x_ref, pe_ref, o_ref, *,
                           keep_prob, inv_keep, tb, ts, s_total, d_total):
    # Broadcast add (compute in f32, cast back at the store).
    y = x_ref[...].astype(jnp.float32) + pe_ref[...][None].astype(jnp.float32)

    shp = x_ref.shape                                  # (TB, TS, D)
    s = pl.program_id(0)
    b = pl.program_id(1)

    # Global element index -> counter-based hash -> uniform in [0, 1).
    bi = lax.broadcasted_iota(jnp.int32, shp, 0).astype(jnp.uint32) \
        + (b * tb).astype(jnp.uint32)
    si = lax.broadcasted_iota(jnp.int32, shp, 1).astype(jnp.uint32) \
        + (s * ts).astype(jnp.uint32)
    di = lax.broadcasted_iota(jnp.int32, shp, 2).astype(jnp.uint32)
    idx = (bi * jnp.uint32(s_total) + si) * jnp.uint32(d_total) + di

    seed_u = seed_ref[0].astype(jnp.uint32)
    h = _splitmix32(idx ^ (seed_u * jnp.uint32(0x9E3779B9)) ^ jnp.uint32(0x85EBCA6B))
    # Top-24 bits -> exact int32 -> float in [0, 1).
    r = lax.shift_right_logical(h, jnp.uint32(8)).astype(jnp.int32)
    r = r.astype(jnp.float32) * jnp.float32(1.0 / (1 << 24))

    keep = r < jnp.float32(keep_prob)
    scale = jnp.where(keep, jnp.float32(inv_keep), jnp.float32(0.0))
    o_ref[...] = (y * scale).astype(o_ref.dtype)


# --------------------------------------------------------------------------
# Tiling helpers
# --------------------------------------------------------------------------
_BLOCK_BUDGET_BYTES = 2 * 1024 * 1024   # ~2 MiB x-block: near HBM roofline,
                                        # safe on v7x's 64 MiB VMEM with the
                                        # dropout temporaries included.


def _choose_tiles(B: int, S: int, D: int, itemsize: int, budget: int):
    """Pick (TB, TS): seq tile respects dtype sublane rules, batch folds in."""
    sub = {4: 8, 2: 16, 1: 32}.get(itemsize, 8)        # sublane multiple
    row_bytes = D * itemsize
    if S * row_bytes <= budget or S <= sub:
        ts = S                                          # full dim -> always legal
    else:
        ts = max(sub, (budget // (row_bytes * sub)) * sub)
        ts = min(ts, S)
    tb = max(1, min(B, budget // max(1, ts * row_bytes)))
    return tb, ts


# --------------------------------------------------------------------------
# Wrapper
# --------------------------------------------------------------------------
def position_encoding_forward(x: jax.Array, pe: jax.Array, *,
                              dropout_p: float = 0.3,
                              deterministic: bool = True,
                              seed: int = 0) -> jax.Array:
    """x: (B, S, D), pe: (S, D) -> (B, S, D)."""
    B, S, D = x.shape
    assert pe.shape == (S, D)
    itemsize = jnp.dtype(x.dtype).itemsize

    # Lane-dense layout: if D is not a multiple of 128, fold (S, D) into one
    # lane axis of S*D (when it is 128-aligned and fits the block budget) so
    # output stores are unmasked.
    flatten = (D % 128 != 0) and ((S * D) % 128 == 0) \
        and (S * D * itemsize <= _BLOCK_BUDGET_BYTES)
    if flatten:
        x_w = x.reshape(B, 1, S * D)
        pe_w = pe.reshape(1, S * D).astype(x.dtype)
        S_w, D_w = 1, S * D
    else:
        x_w = x
        pe_w = pe.astype(x.dtype)
        S_w, D_w = S, D

    tb, ts = _choose_tiles(B, S_w, D_w, itemsize, _BLOCK_BUDGET_BYTES)
    grid = (pl.cdiv(S_w, ts), pl.cdiv(B, tb))   # seq outer, batch inner:
                                                # PE tile stays VMEM-resident.

    compiler_params = pltpu.CompilerParams(
        # Fully independent steps.  On v7x, pltpu.CORE_PARALLEL on the outer
        # axis would shard the grid across both TensorCores.
        dimension_semantics=("parallel", "parallel"),
        vmem_limit_bytes=32 * 1024 * 1024,   # > v5e's 16 MiB default, < v7x phys.
    )
    out_shape = jax.ShapeDtypeStruct(x_w.shape, x.dtype)

    if deterministic or dropout_p <= 0.0:
        x_spec = pl.BlockSpec((tb, ts, D_w), lambda s, b: (b, s, 0))
        pe_spec = pl.BlockSpec((ts, D_w), lambda s, b: (s, 0))
        grid_spec = pltpu.PrefetchScalarGridSpec(
            num_scalar_prefetch=0, grid=grid,
            in_specs=[x_spec, pe_spec], out_specs=x_spec)
        out = pl.pallas_call(
            _pe_add_kernel, grid_spec=grid_spec, out_shape=out_shape,
            compiler_params=compiler_params,
        )(x_w, pe_w)
        return out.reshape(B, S, D)

    keep_prob = max(0.0, 1.0 - float(dropout_p))
    inv_keep = 0.0 if keep_prob <= 0.0 else 1.0 / keep_prob   # p==1 guard
    seed_arr = jnp.asarray([seed], dtype=jnp.int32)

    # index_maps receive the scalar-prefetch ref as a trailing positional arg.
    x_spec = pl.BlockSpec((tb, ts, D_w), lambda s, b, seed_ref: (b, s, 0))
    pe_spec = pl.BlockSpec((ts, D_w), lambda s, b, seed_ref: (s, 0))
    grid_spec = pltpu.PrefetchScalarGridSpec(
        num_scalar_prefetch=1, grid=grid,
        in_specs=[x_spec, pe_spec], out_specs=x_spec)
    kernel = partial(_pe_add_dropout_kernel,
                     keep_prob=keep_prob, inv_keep=inv_keep,
                     tb=tb, ts=ts, s_total=S_w, d_total=D_w)
    out = pl.pallas_call(
        kernel, grid_spec=grid_spec, out_shape=out_shape,
        compiler_params=compiler_params,
    )(seed_arr, x_w, pe_w)
    return out.reshape(B, S, D)


# --------------------------------------------------------------------------
# Self-test
# --------------------------------------------------------------------------
if __name__ == "__main__":
    batch, seq, d_model = 2, 8, 32

    key = jax.random.PRNGKey(0)
    x = jax.random.normal(key, (batch, seq, d_model), dtype=jnp.float32)
    pe = sinusoidal_position_encoding(seq, d_model)
    ref = x + pe[None, :, :]

    # Eval path: dropout is identity -> exact reference check.
    out = position_encoding_forward(x, pe, deterministic=True)
    out = jax.block_until_ready(out)
    assert out.shape == (batch, seq, d_model)
    assert out.dtype == jnp.float32
    assert jnp.allclose(out, ref, atol=1e-6, rtol=1e-6)

    # Training path: inverted dropout (p=0.3) via counter-based hash PRNG.
    out_tr = position_encoding_forward(
        x, pe, dropout_p=0.3, deterministic=False, seed=123)
    out_tr = jax.block_until_ready(out_tr)
    inv_keep = 1.0 / 0.7
    is_dropped = jnp.isclose(out_tr, 0.0, atol=1e-6)
    is_kept = jnp.isclose(out_tr, ref * inv_keep, atol=1e-5, rtol=1e-5)
    assert out_tr.shape == (batch, seq, d_model)
    assert bool(jnp.all(is_dropped | is_kept))
    drop_frac = float(jnp.mean(is_dropped.astype(jnp.float32)))
    assert 0.10 < drop_frac < 0.50, f"dropout fraction {drop_frac} off from 0.3"

    print("KERNEL_OK")
</pallas_src>

<mosaic_0001>
module attributes {stable_mosaic.version = 11 : i64} {
  func.func @_pe_add_kernel(%arg0: i32, %arg1: i32, %arg2: memref<2x1x256xf32, #tpu.memory_space<vmem>>, %arg3: memref<1x256xf32, #tpu.memory_space<vmem>>, %arg4: memref<2x1x256xf32, #tpu.memory_space<vmem>>) attributes {dimension_semantics = [#tpu.dimension_semantics<parallel>, #tpu.dimension_semantics<parallel>], iteration_bounds = array<i64: 1, 1>, scalar_prefetch = 0 : i64, scratch_operands = 0 : i64, tpu.core_type = #tpu.core_type<tc>, window_params = [{transform_indices = @transform_0, window_bounds = array<i64: 2, 1, 256>}, {transform_indices = @transform_1, window_bounds = array<i64: 1, 256>}, {transform_indices = @transform_2, window_bounds = array<i64: 2, 1, 256>}]} {
    %c0 = arith.constant 0 : index
    %c0_0 = arith.constant 0 : index
    %c0_1 = arith.constant 0 : index
    %0 = vector.load %arg2[%c0, %c0_0, %c0_1] : memref<2x1x256xf32, #tpu.memory_space<vmem>>, vector<2x1x256xf32>
    %c0_2 = arith.constant 0 : index
    %c0_3 = arith.constant 0 : index
    %1 = vector.load %arg3[%c0_2, %c0_3] : memref<1x256xf32, #tpu.memory_space<vmem>>, vector<1x256xf32>
    %2 = vector.shape_cast %1 : vector<1x256xf32> to vector<1x1x256xf32>
    %3 = vector.broadcast %2 : vector<1x1x256xf32> to vector<2x1x256xf32>
    %4 = arith.addf %0, %3 : vector<2x1x256xf32>
    %c0_4 = arith.constant 0 : index
    %c0_5 = arith.constant 0 : index
    %c0_6 = arith.constant 0 : index
    %5 = vector.load %arg4[%c0_4, %c0_5, %c0_6] : memref<2x1x256xf32, #tpu.memory_space<vmem>>, vector<2x1x256xf32>
    tpu.vector_store %arg4[%c0_4, %c0_5, %c0_6], %4 {strides = array<i32>} : memref<2x1x256xf32, #tpu.memory_space<vmem>>, vector<2x1x256xf32>,
    return
  }
  func.func @transform_0(%arg0: i32, %arg1: i32) -> (i32, i32, i32) {
    %c0_i32 = arith.constant 0 : i32
    %c0_i32_0 = arith.constant 0 : i32
    return %arg1, %arg0, %c0_i32 : i32, i32, i32
  }
  func.func @transform_1(%arg0: i32, %arg1: i32) -> (i32, i32) {
    %c0_i32 = arith.constant 0 : i32
    %c0_i32_0 = arith.constant 0 : i32
    return %arg0, %c0_i32 : i32, i32
  }
  func.func @transform_2(%arg0: i32, %arg1: i32) -> (i32, i32, i32) {
    %c0_i32 = arith.constant 0 : i32
    %c0_i32_0 = arith.constant 0 : i32
    return %arg1, %arg0, %c0_i32 : i32, i32, i32
  }
}

</mosaic_0001>

<llo_original>
// kernel: tpu_custom_call.1
$region0: #{tpu_custom_call.1}
  #allocation0 [shape = 'u32[]', space=smem, size = 0x4, offset = 0x4, fixed_abs, tag = 'smem constant byte address 0x4 - core index']
  #allocation1 [shape = 'u32[72,128]{1,0:T(1,128)}', space=vmem, size = 0x9000, scoped, tag = 'internal scratch']
  %s0 = inlined_call_operand.hbm [shape: f32[2,1,256], index: 0, kind: input, shape index: {}]
  %s1 = inlined_call_operand.hbm [shape: f32[1,256], index: 1, kind: input, shape index: {}]
  %s2 = inlined_call_operand.hbm [shape: f32[2,1,256], index: 2, kind: output, shape index: {}]
  %s3 = sld [smem:[#allocation0]]
  $region26: #{tpu_custom_call.1} parent=0
    _
  %s5 = ssub.s32 1, %s3
  %s6 = scalar_select 0, %s5, %s3
  $region1: #{tpu_custom_call.1} parent=0
    #allocation2 [shape = 'u8[2048]{0}', space=vmem, size = 0x800, scoped, tag = 'input window, operand 0, single buffered']
    #allocation3 [shape = 's32[1]{0}', space=sflag, size = 0x4, scoped, tag = 'scoped memory for tpu_custom_call.1']
    #allocation4 [shape = 's32[1]{0}', space=sflag, size = 0x4, scoped, tag = 'scoped memory for tpu_custom_call.1']
    #allocation5 [shape = 'u8[1024]{0}', space=vmem, size = 0x400, scoped, tag = 'input window, operand 1, single buffered']
    #allocation6 [shape = 's32[1]{0}', space=sflag, size = 0x4, scoped, tag = 'scoped memory for tpu_custom_call.1']
    #allocation7 [shape = 'u8[2048]{0}', space=vmem, size = 0x800, scoped, tag = 'output window, operand 0, single buffered']
    %7 = vsyncpa [#allocation3], 0
    %8 = vsyncpa [#allocation6], 0
    %9 = vsyncpa [#allocation4], 0
    // Predicated region
    $region2: #{tpu_custom_call.1} parent=1 // pred_check
      _
    $region3: #{tpu_custom_call.1} parent=1 // pred_check_branch
      %11 = sbr.rel (0) target = $region5
    $region4: #{tpu_custom_call.1} parent=1 // pred_region
      %13 = vsyncadd [#allocation3], 0
      %s14 = sshll.u32 %s0, 4
      %s15 = int_to_ptr.hbm [resolvable:$true] %s14
      %s16 = sshll.u32 [#allocation2], 4
      %s17 = int_to_ptr.vmem [resolvable:$true] %s16
      %22 = dma.hbm_to_vmem [thread:$0]  %s15, 64, %s17, [#allocation3], 32, 32, 2
    $region5: #{tpu_custom_call.1} parent=1 // pred_fallthru
      _
    // Predicated region
    $region6: #{tpu_custom_call.1} parent=1 // pred_check
      _
    $region7: #{tpu_custom_call.1} parent=1 // pred_check_branch
      %24 = sbr.rel (0) target = $region9
    $region8: #{tpu_custom_call.1} parent=1 // pred_region
      %26 = vsyncadd [#allocation6], 0
      %s28 = sshll.u32 %s1, 4
      %s29 = int_to_ptr.hbm [resolvable:$true] %s28
      %s30 = sshll.u32 [#allocation5], 4
      %s31 = int_to_ptr.vmem [resolvable:$true] %s30
      %33 = dma.hbm_to_vmem [thread:$0]  %s29, 32, %s31, [#allocation6]
    $region9: #{tpu_custom_call.1} parent=1 // pred_fallthru
      _
    // Predicated region
    $region10: #{tpu_custom_call.1} parent=1 // pred_check
      _
    $region11: #{tpu_custom_call.1} parent=1 // pred_check_branch
      %35 = sbr.rel (0) target = $region13
    $region12: #{tpu_custom_call.1} parent=1 // pred_region
      %37 = dma.done [#allocation3], 64
    $region13: #{tpu_custom_call.1} parent=1 // pred_fallthru
      _
    // Predicated region
    $region14: #{tpu_custom_call.1} parent=1 // pred_check
      _
    $region15: #{tpu_custom_call.1} parent=1 // pred_check_branch
      %39 = sbr.rel (0) target = $region17
    $region16: #{tpu_custom_call.1} parent=1 // pred_region
      %41 = dma.done [#allocation6], 32
    $region17: #{tpu_custom_call.1} parent=1 // pred_fallthru
      _
    %v42 = vld [vmem:[#allocation2] sm:$0x3]
    %v43 = vld [vmem:[#allocation2 + $0x2] sm:$0x3]
    %v44 = vld [vmem:[#allocation5] sm:$0x3]
    %v45 = vadd.f32 %v42, %v44
    %v46 = vadd.f32 %v43, %v44
    %v47 = vlaneseq
    %vm48 = vcmp.ge.s32.totalorder %v47, 0
    %vm49 = vcmp.lt.s32.totalorder %v47, 256
    %vm50 = vmand %vm48, %vm49
    %51 = vst.msk [vmem:[#allocation7] sm:$0x3] %vm50, %v45
    %52 = vst.msk [vmem:[#allocation7 + $0x2] sm:$0x3] %vm50, %v46
    // Predicated region
    $region18: #{tpu_custom_call.1} parent=1 // pred_check
      _
    $region19: #{tpu_custom_call.1} parent=1 // pred_check_branch
      %54 = sbr.rel (0) target = $region21
    $region20: #{tpu_custom_call.1} parent=1 // pred_region
      %56 = vsyncadd [#allocation4], 0
      %s57 = sshll.u32 [#allocation7], 4
      %s58 = int_to_ptr.vmem [resolvable:$true] %s57
      %s59 = sshll.u32 %s2, 4
      %s60 = int_to_ptr.hbm [resolvable:$true] %s59
      %65 = dma.vmem_to_hbm [thread:$0]  %s58, 64, %s60, [#allocation4], 32, 32, 2
    $region21: #{tpu_custom_call.1} parent=1 // pred_fallthru
      _
    // Predicated region
    $region22: #{tpu_custom_call.1} parent=1 // pred_check
      _
    $region23: #{tpu_custom_call.1} parent=1 // pred_check_branch
      %67 = sbr.rel (0) target = $region25
    $region24: #{tpu_custom_call.1} parent=1 // pred_region
      %69 = dma.done [#allocation4], 64
    $region25: #{tpu_custom_call.1} parent=1 // pred_fallthru
      _
    %70 = vsyncpa [#allocation3], 1
    %71 = vsyncpa [#allocation6], 1
    %72 = vsyncpa [#allocation4], 1

</llo_original>
